<compile_context>
chip_gen: v6e
topology: v6e:2x2x1
jax: 0.10.0
libtpu: 0.0.40
codegen_flags: <defaults>
</compile_context>

<pallas_src>
import jax
import jax.numpy as jnp
from jax.experimental import pallas as pl
from jax.experimental.pallas import tpu as pltpu


def se_kernel(x_ref, w1t_ref, b1_ref, w2t_ref, b2_ref, o_ref):
    # x_ref block: (Nb, C, HWp), native dtype.
    x = x_ref[...]

    # Global average pool: accumulate the sum in f32 (zero padding along the
    # lane axis does not change the sum); the 1/HW scale is folded into w1t.
    pooled = jnp.sum(x, axis=2, dtype=jnp.float32)                    # (Nb, C)

    # fc1 (folded BN) + ReLU: (Nb, C) @ (C, Cr) + (1, Cr)
    hidden = jnp.dot(pooled, w1t_ref[...],
                     preferred_element_type=jnp.float32) + b1_ref[...]
    hidden = jnp.maximum(hidden, 0.0)                                 # (Nb, Cr)

    # fc2 (folded BN): (Nb, Cr) @ (Cr, C) + (1, C)
    pre = jnp.dot(hidden, w2t_ref[...],
                  preferred_element_type=jnp.float32) + b2_ref[...]   # (Nb, C)

    # hard-sigmoid: clamp(x + 3, 0, 6) / 6
    atten = jnp.clip(pre + 3.0, 0.0, 6.0) * (1.0 / 6.0)               # (Nb, C)

    # Broadcast multiply in the input's native dtype (no persistent f32 copy
    # of the tile is kept alive).
    o_ref[...] = (x * atten.astype(x.dtype)[:, :, None]).astype(o_ref.dtype)


def _pick_batch_tile(n, c, hwp, itemsize, vmem_budget_bytes=8 * 1024 * 1024):
    """Largest per-step sample count such that the double-buffered x input +
    output blocks stay under the VMEM budget (safe on v5e/v6e/v7x scoped
    defaults), there are >= 2 grid steps when N >= 2 (megacore), and the tile
    divides N exactly."""
    per_sample = c * hwp * itemsize * 4        # in + out, each double-buffered
    nb = max(1, min(n, vmem_budget_bytes // max(1, per_sample)))
    if n >= 2:
        nb = min(nb, (n + 1) // 2)
    while n % nb != 0:
        nb -= 1
    return nb


@jax.jit
def se_layer(x, w1, b1, w2, b2):
    N, C, H, W = x.shape
    HW = H * W
    Cr = w1.shape[0]

    # Lane-dense spatial axis: pad HW up to a multiple of 128 so output
    # stores are unmasked.
    HWp = ((HW + 127) // 128) * 128
    x2 = x.reshape(N, C, HW)
    if HWp != HW:
        x2 = jnp.pad(x2, ((0, 0), (0, 0), (0, HWp - HW)))

    # Fold the 1/HW pooling scale into fc1 (free, wrapper-side); transpose
    # weights so both FCs are batched (rows = samples) MXU matmuls; biases
    # lane-major (1, Cr) / (1, C).
    w1t = (w1 * (1.0 / HW)).T.astype(jnp.float32)    # (C, Cr)
    w2t = w2.T.astype(jnp.float32)                   # (Cr, C)
    b1r = b1.reshape(1, Cr).astype(jnp.float32)
    b2r = b2.reshape(1, C).astype(jnp.float32)

    Nb = _pick_batch_tile(N, C, HWp, x.dtype.itemsize)

    out = pl.pallas_call(
        se_kernel,
        out_shape=jax.ShapeDtypeStruct((N, C, HWp), x.dtype),
        grid_spec=pltpu.PrefetchScalarGridSpec(
            num_scalar_prefetch=0,
            grid=(N // Nb,),
            in_specs=[
                pl.BlockSpec((Nb, C, HWp), lambda n: (n, 0, 0)),
                pl.BlockSpec((C, Cr), lambda n: (0, 0)),
                pl.BlockSpec((1, Cr), lambda n: (0, 0)),
                pl.BlockSpec((Cr, C), lambda n: (0, 0)),
                pl.BlockSpec((1, C), lambda n: (0, 0)),
            ],
            out_specs=pl.BlockSpec((Nb, C, HWp), lambda n: (n, 0, 0)),
        ),
        compiler_params=pltpu.CompilerParams(
            dimension_semantics=("parallel",)),
    )(x2, w1t, b1r, w2t, b2r)

    if HWp != HW:
        out = out[:, :, :HW]
    return out.reshape(N, C, H, W)


def make_params(key, in_channels, reduction=4, eps=1e-5):
    """Deterministic synthetic params, with BatchNorm folded into the convs."""
    cr = in_channels // reduction
    ks = jax.random.split(key, 10)

    # conv weights (kernel_size=1, bias=False): squeeze trailing 1x1 dims
    w_conv1 = jax.random.normal(ks[0], (cr, in_channels), jnp.float32) * 0.5
    w_conv2 = jax.random.normal(ks[1], (in_channels, cr), jnp.float32) * 0.5

    # BatchNorm2d(cr) eval-mode parameters
    g1 = jax.random.normal(ks[2], (cr,), jnp.float32) * 0.1 + 1.0
    beta1 = jax.random.normal(ks[3], (cr,), jnp.float32) * 0.1
    mean1 = jax.random.normal(ks[4], (cr,), jnp.float32) * 0.1
    var1 = jnp.abs(jax.random.normal(ks[5], (cr,), jnp.float32)) * 0.1 + 0.5

    # BatchNorm2d(in_channels) eval-mode parameters
    g2 = jax.random.normal(ks[6], (in_channels,), jnp.float32) * 0.1 + 1.0
    beta2 = jax.random.normal(ks[7], (in_channels,), jnp.float32) * 0.1
    mean2 = jax.random.normal(ks[8], (in_channels,), jnp.float32) * 0.1
    var2 = jnp.abs(jax.random.normal(ks[9], (in_channels,), jnp.float32)) * 0.1 + 0.5

    # Fold BN into the 1x1 convs: y = scale*(Wx - mean) + beta
    s1 = g1 / jnp.sqrt(var1 + eps)
    w1 = w_conv1 * s1[:, None]        # (cr, C)
    b1 = beta1 - mean1 * s1           # (cr,)

    s2 = g2 / jnp.sqrt(var2 + eps)
    w2 = w_conv2 * s2[:, None]        # (C, cr)
    b2 = beta2 - mean2 * s2           # (C,)

    return w1, b1, w2, b2


def se_layer_ref(x, w1, b1, w2, b2):
    """Pure-JAX reference for validation."""
    pooled = jnp.mean(x, axis=(2, 3))                      # (N, C)
    h = jnp.maximum(pooled @ w1.T + b1, 0.0)               # (N, Cr)
    pre = h @ w2.T + b2                                    # (N, C)
    atten = jnp.clip(pre + 3.0, 0.0, 6.0) / 6.0
    return x * atten[:, :, None, None]


if __name__ == "__main__":
    key = jax.random.PRNGKey(0)
    k_x1, k_x2, k_p = jax.random.split(key, 3)

    N, C = 2, 8
    w1, b1, w2, b2 = make_params(k_p, C, reduction=4)

    # Case 1: HW = 256 (already lane-dense, no padding needed).
    H, W = 16, 16
    x = jax.random.normal(k_x1, (N, C, H, W), jnp.float32)
    out = jax.block_until_ready(se_layer(x, w1, b1, w2, b2))
    ref = se_layer_ref(x, w1, b1, w2, b2)
    assert out.shape == (N, C, H, W)
    assert jnp.allclose(out, ref, atol=1e-5, rtol=1e-5)

    # Case 2: HW = 49 -> zero-padded to 128 in the wrapper (lane-dense path).
    H2, W2 = 7, 7
    x_small = jax.random.normal(k_x2, (N, C, H2, W2), jnp.float32)
    out2 = jax.block_until_ready(se_layer(x_small, w1, b1, w2, b2))
    ref2 = se_layer_ref(x_small, w1, b1, w2, b2)
    assert out2.shape == (N, C, H2, W2)
    assert jnp.allclose(out2, ref2, atol=1e-5, rtol=1e-5)

    print("KERNEL_OK")
</pallas_src>

<mosaic_0001>
module attributes {stable_mosaic.version = 11 : i64} {
  func.func @se_kernel(%arg0: i32, %arg1: memref<1x8x256xf32, #tpu.memory_space<vmem>>, %arg2: memref<8x2xf32, #tpu.memory_space<vmem>>, %arg3: memref<1x2xf32, #tpu.memory_space<vmem>>, %arg4: memref<2x8xf32, #tpu.memory_space<vmem>>, %arg5: memref<1x8xf32, #tpu.memory_space<vmem>>, %arg6: memref<1x8x256xf32, #tpu.memory_space<vmem>>) attributes {dimension_semantics = [#tpu.dimension_semantics<parallel>], iteration_bounds = array<i64: 2>, scalar_prefetch = 0 : i64, scratch_operands = 0 : i64, tpu.core_type = #tpu.core_type<tc>, window_params = [{transform_indices = @transform_0, window_bounds = array<i64: 1, 8, 256>}, {pipeline_mode = #tpu.pipeline_mode<synchronous>, transform_indices = @transform_1, window_bounds = array<i64: 8, 2>}, {pipeline_mode = #tpu.pipeline_mode<synchronous>, transform_indices = @transform_2, window_bounds = array<i64: 1, 2>}, {pipeline_mode = #tpu.pipeline_mode<synchronous>, transform_indices = @transform_3, window_bounds = array<i64: 2, 8>}, {pipeline_mode = #tpu.pipeline_mode<synchronous>, transform_indices = @transform_4, window_bounds = array<i64: 1, 8>}, {transform_indices = @transform_5, window_bounds = array<i64: 1, 8, 256>}]} {
    %c0 = arith.constant 0 : index
    %c0_0 = arith.constant 0 : index
    %c0_1 = arith.constant 0 : index
    %0 = vector.load %arg1[%c0, %c0_0, %c0_1] : memref<1x8x256xf32, #tpu.memory_space<vmem>>, vector<1x8x256xf32>
    %cst = arith.constant dense<0.000000e+00> : vector<1x8xf32>
    %1 = vector.multi_reduction <add>, %0, %cst [2] : vector<1x8x256xf32> to vector<1x8xf32>
    %c0_2 = arith.constant 0 : index
    %c0_3 = arith.constant 0 : index
    %2 = vector.load %arg2[%c0_2, %c0_3] : memref<8x2xf32, #tpu.memory_space<vmem>>, vector<8x2xf32>
    %cst_4 = arith.constant dense<0.000000e+00> : vector<1x2xf32>
    %3 = tpu.matmul %1, %2, %cst_4 {dimension_numbers = #tpu.dot_dimension_numbers<[1], [0], [0], [1], [0, 0, 1, 1], [], []>} : vector<1x8xf32>, vector<8x2xf32>, vector<1x2xf32> -> vector<1x2xf32>
    %c0_5 = arith.constant 0 : index
    %c0_6 = arith.constant 0 : index
    %4 = vector.load %arg3[%c0_5, %c0_6] : memref<1x2xf32, #tpu.memory_space<vmem>>, vector<1x2xf32>
    %5 = arith.addf %3, %4 : vector<1x2xf32>
    %cst_7 = arith.constant 0.000000e+00 : f32
    %6 = vector.broadcast %cst_7 : f32 to vector<1x2xf32>
    %7 = arith.maximumf %5, %6 : vector<1x2xf32>
    %c0_8 = arith.constant 0 : index
    %c0_9 = arith.constant 0 : index
    %8 = vector.load %arg4[%c0_8, %c0_9] : memref<2x8xf32, #tpu.memory_space<vmem>>, vector<2x8xf32>
    %cst_10 = arith.constant dense<0.000000e+00> : vector<1x8xf32>
    %9 = tpu.matmul %7, %8, %cst_10 {dimension_numbers = #tpu.dot_dimension_numbers<[1], [0], [0], [1], [0, 0, 1, 1], [], []>} : vector<1x2xf32>, vector<2x8xf32>, vector<1x8xf32> -> vector<1x8xf32>
    %c0_11 = arith.constant 0 : index
    %c0_12 = arith.constant 0 : index
    %10 = vector.load %arg5[%c0_11, %c0_12] : memref<1x8xf32, #tpu.memory_space<vmem>>, vector<1x8xf32>
    %11 = arith.addf %9, %10 : vector<1x8xf32>
    %cst_13 = arith.constant 3.000000e+00 : f32
    %12 = vector.broadcast %cst_13 : f32 to vector<1x8xf32>
    %13 = arith.addf %11, %12 : vector<1x8xf32>
    %cst_14 = arith.constant 0.000000e+00 : f32
    %cst_15 = arith.constant 6.000000e+00 : f32
    %14 = vector.broadcast %cst_14 : f32 to vector<1x8xf32>
    %15 = arith.maximumf %14, %13 : vector<1x8xf32>
    %16 = vector.broadcast %cst_15 : f32 to vector<1x8xf32>
    %17 = arith.minimumf %16, %15 : vector<1x8xf32>
    %cst_16 = arith.constant 0.166666672 : f32
    %18 = vector.broadcast %cst_16 : f32 to vector<1x8xf32>
    %19 = arith.mulf %17, %18 : vector<1x8xf32>
    %20 = vector.shape_cast %19 : vector<1x8xf32> to vector<1x8x1xf32>
    %21 = vector.broadcast %20 : vector<1x8x1xf32> to vector<1x8x256xf32>
    %22 = arith.mulf %0, %21 : vector<1x8x256xf32>
    %c0_17 = arith.constant 0 : index
    %c0_18 = arith.constant 0 : index
    %c0_19 = arith.constant 0 : index
    %23 = vector.load %arg6[%c0_17, %c0_18, %c0_19] : memref<1x8x256xf32, #tpu.memory_space<vmem>>, vector<1x8x256xf32>
    tpu.vector_store %arg6[%c0_17, %c0_18, %c0_19], %22 {strides = array<i32>} : memref<1x8x256xf32, #tpu.memory_space<vmem>>, vector<1x8x256xf32>,
    return
  }
  func.func @transform_0(%arg0: i32) -> (i32, i32, i32) {
    %c0_i32 = arith.constant 0 : i32
    %c0_i32_0 = arith.constant 0 : i32
    %c0_i32_1 = arith.constant 0 : i32
    return %arg0, %c0_i32, %c0_i32_0 : i32, i32, i32
  }
  func.func @transform_1(%arg0: i32) -> (i32, i32) {
    %c0_i32 = arith.constant 0 : i32
    %c0_i32_0 = arith.constant 0 : i32
    %c0_i32_1 = arith.constant 0 : i32
    return %c0_i32, %c0_i32_0 : i32, i32
  }
  func.func @transform_2(%arg0: i32) -> (i32, i32) {
    %c0_i32 = arith.constant 0 : i32
    %c0_i32_0 = arith.constant 0 : i32
    %c0_i32_1 = arith.constant 0 : i32
    return %c0_i32, %c0_i32_0 : i32, i32
  }
  func.func @transform_3(%arg0: i32) -> (i32, i32) {
    %c0_i32 = arith.constant 0 : i32
    %c0_i32_0 = arith.constant 0 : i32
    %c0_i32_1 = arith.constant 0 : i32
    return %c0_i32, %c0_i32_0 : i32, i32
  }
  func.func @transform_4(%arg0: i32) -> (i32, i32) {
    %c0_i32 = arith.constant 0 : i32
    %c0_i32_0 = arith.constant 0 : i32
    %c0_i32_1 = arith.constant 0 : i32
    return %c0_i32, %c0_i32_0 : i32, i32
  }
  func.func @transform_5(%arg0: i32) -> (i32, i32, i32) {
    %c0_i32 = arith.constant 0 : i32
    %c0_i32_0 = arith.constant 0 : i32
    %c0_i32_1 = arith.constant 0 : i32
    return %arg0, %c0_i32, %c0_i32_0 : i32, i32, i32
  }
}

</mosaic_0001>

<llo_original>
// kernel: se_layer.1
$region0: #{se_layer.1}
  #allocation0 [shape = 'u32[]', space=smem, size = 0x4, offset = 0x4, fixed_abs, tag = 'smem constant byte address 0x4 - core index']
  #allocation1 [shape = 'u32[144,128]{1,0:T(1,128)}', space=vmem, size = 0x12000, scoped, tag = 'internal scratch']
  %s0 = inlined_call_operand.vmem [shape: f32[2,8,256], index: 0, kind: input, shape index: {}]
  %s1 = inlined_call_operand.vmem [shape: f32[8,2], index: 1, kind: input, shape index: {}]
  %s2 = inlined_call_operand.vmem [shape: f32[1,2], index: 2, kind: input, shape index: {}]
  %s3 = inlined_call_operand.vmem [shape: f32[2,8], index: 3, kind: input, shape index: {}]
  %s4 = inlined_call_operand.vmem [shape: f32[1,8], index: 4, kind: input, shape index: {}]
  %s5 = inlined_call_operand.vmem [shape: f32[2,8,256], index: 5, kind: output, shape index: {}]
  %s6 = sld [smem:[#allocation0]]
  $region53: #{se_layer.1} parent=0
    _
  %s8 = ssub.s32 1, %s6
  %s9 = scalar_select 0, %s8, %s6
  loop: start=0, step=1, limit=4
  $region2: #{se_layer.1} parent=0 // loop_pre_header
    _
  $region3: #{se_layer.1} parent=0 // loop_header
    %s11 = sphi 0, %s15
    %p12 = scmp.ge.s32.totalorder %s11, 4
    %s21 = sphi 0, %s23
    %s24 = sphi 0, %s21
    %s25 = sphi 0, %s24
    %s41 = sphi 0, %s25
    %s45 = sphi 0, %s45
    %s47 = sphi 0, %s45
    %s48 = sphi 0, %s47
    %s62 = sphi 0, %s48
    %s66 = sphi 0, %s66
    %s68 = sphi 0, %s66
    %s69 = sphi 0, %s68
    %s83 = sphi 0, %s69
    %s87 = sphi 0, %s87
    %s89 = sphi 0, %s87
    %s90 = sphi 0, %s89
    %s104 = sphi 0, %s90
    %s108 = sphi 0, %s108
    %s110 = sphi 0, %s108
    %s111 = sphi 0, %s110
    %s125 = sphi 0, %s111
    %s131 = sphi 0, %s133
    %s134 = sphi 0, %s131
    %s135 = sphi 0, %s134
    %s151 = sphi 0, %s135
  $region4: #{se_layer.1} parent=0 // loop_header_branch
    %14 = sbr.rel (%p12) target = $region8
  $region5: #{se_layer.1} parent=0 // loop_body
    %s16 = ssub.s32 %s11, 1
    %s17 = ssub.s32 %s11, 2
    %s18 = sadd.s32 %s11, 1
    %s19 = ssub.s32 %s11, %s18
    %p20 = scmp.eq.s32.totalorder %s19, 0
    %s22 = sadd.s32 %s21, 1
    %s23 = scalar_select %p20, %s21, %s22
    %p26 = pneg %p20
    %p27 = scmp.eq.s32.totalorder %s11, 1
    %p28 = por %p26, %p27
    %p29 = scmp.ne.s32.totalorder %s21, %s24
    %p30 = scmp.eq.s32.totalorder %s11, 0
    %p31 = por %p29, %p30
    %p32 = scmp.ne.s32.totalorder %s21, %s24
    %p33 = scmp.eq.s32.totalorder %s16, 1
    %p34 = por %p32, %p33
    %p35 = scmp.ne.s32.totalorder %s24, %s25
    %p36 = scmp.eq.s32.totalorder %s16, 0
    %p37 = por %p35, %p36
    %p38 = scmp.ne.s32.totalorder %s24, %s25
    %p39 = scmp.eq.s32.totalorder %s17, 1
    %p40 = por %p38, %p39
    %p42 = scmp.ne.s32.totalorder %s25, %s41
    %p43 = scmp.eq.s32.totalorder %s17, 0
    %p44 = por %p42, %p43
    %s46 = sadd.s32 %s45, 1
    %p49 = scmp.eq.s32.totalorder %s11, 1
    %p50 = scmp.ne.s32.totalorder %s45, %s47
    %p51 = scmp.eq.s32.totalorder %s11, 0
    %p52 = por %p50, %p51
    %p53 = scmp.ne.s32.totalorder %s45, %s47
    %p54 = scmp.eq.s32.totalorder %s16, 1
    %p55 = por %p53, %p54
    %p56 = scmp.ne.s32.totalorder %s47, %s48
    %p57 = scmp.eq.s32.totalorder %s16, 0
    %p58 = por %p56, %p57
    %p59 = scmp.ne.s32.totalorder %s47, %s48
    %p60 = scmp.eq.s32.totalorder %s17, 1
    %p61 = por %p59, %p60
    %p63 = scmp.ne.s32.totalorder %s48, %s62
    %p64 = scmp.eq.s32.totalorder %s17, 0
    %p65 = por %p63, %p64
    %s67 = sadd.s32 %s66, 1
    %p70 = scmp.eq.s32.totalorder %s11, 1
    %p71 = scmp.ne.s32.totalorder %s66, %s68
    %p72 = scmp.eq.s32.totalorder %s11, 0
    %p73 = por %p71, %p72
    %p74 = scmp.ne.s32.totalorder %s66, %s68
    %p75 = scmp.eq.s32.totalorder %s16, 1
    %p76 = por %p74, %p75
    %p77 = scmp.ne.s32.totalorder %s68, %s69
    %p78 = scmp.eq.s32.totalorder %s16, 0
    %p79 = por %p77, %p78
    %p80 = scmp.ne.s32.totalorder %s68, %s69
    %p81 = scmp.eq.s32.totalorder %s17, 1
    %p82 = por %p80, %p81
    %p84 = scmp.ne.s32.totalorder %s69, %s83
    %p85 = scmp.eq.s32.totalorder %s17, 0
    %p86 = por %p84, %p85
    %s88 = sadd.s32 %s87, 1
    %p91 = scmp.eq.s32.totalorder %s11, 1
    %p92 = scmp.ne.s32.totalorder %s87, %s89
    %p93 = scmp.eq.s32.totalorder %s11, 0
    %p94 = por %p92, %p93
    %p95 = scmp.ne.s32.totalorder %s87, %s89
    %p96 = scmp.eq.s32.totalorder %s16, 1
    %p97 = por %p95, %p96
    %p98 = scmp.ne.s32.totalorder %s89, %s90
    %p99 = scmp.eq.s32.totalorder %s16, 0
    %p100 = por %p98, %p99
    %p101 = scmp.ne.s32.totalorder %s89, %s90
    %p102 = scmp.eq.s32.totalorder %s17, 1
    %p103 = por %p101, %p102
    %p105 = scmp.ne.s32.totalorder %s90, %s104
    %p106 = scmp.eq.s32.totalorder %s17, 0
    %p107 = por %p105, %p106
    %s109 = sadd.s32 %s108, 1
    %p112 = scmp.eq.s32.totalorder %s11, 1
    %p113 = scmp.ne.s32.totalorder %s108, %s110
    %p114 = scmp.eq.s32.totalorder %s11, 0
    %p115 = por %p113, %p114
    %p116 = scmp.ne.s32.totalorder %s108, %s110
    %p117 = scmp.eq.s32.totalorder %s16, 1
    %p118 = por %p116, %p117
    %p119 = scmp.ne.s32.totalorder %s110, %s111
    %p120 = scmp.eq.s32.totalorder %s16, 0
    %p121 = por %p119, %p120
    %p122 = scmp.ne.s32.totalorder %s110, %s111
    %p123 = scmp.eq.s32.totalorder %s17, 1
    %p124 = por %p122, %p123
    %p126 = scmp.ne.s32.totalorder %s111, %s125
    %p127 = scmp.eq.s32.totalorder %s17, 0
    %p128 = por %p126, %p127
    %s129 = ssub.s32 %s11, %s18
    %p130 = scmp.eq.s32.totalorder %s129, 0
    %s132 = sadd.s32 %s131, 1
    %s133 = scalar_select %p130, %s131, %s132
    %p136 = pneg %p130
    %p137 = scmp.eq.s32.totalorder %s11, 1
    %p138 = por %p136, %p137
    %p139 = scmp.ne.s32.totalorder %s131, %s134
    %p140 = scmp.eq.s32.totalorder %s11, 0
    %p141 = por %p139, %p140
    %p142 = scmp.ne.s32.totalorder %s131, %s134
    %p143 = scmp.eq.s32.totalorder %s16, 1
    %p144 = por %p142, %p143
    %p145 = scmp.ne.s32.totalorder %s134, %s135
    %p146 = scmp.eq.s32.totalorder %s16, 0
    %p147 = por %p145, %p146
    %p148 = scmp.ne.s32.totalorder %s134, %s135
    %p149 = scmp.eq.s32.totalorder %s17, 1
    %p150 = por %p148, %p149
    %p152 = scmp.ne.s32.totalorder %s135, %s151
    %p153 = scmp.eq.s32.totalorder %s17, 0
    %p154 = por %p152, %p153
    %p155 = scmp.le.s32.totalorder 1, %s11
    %p156 = scmp.lt.s32.totalorder %s11, 3
    %p157 = pnand %p155, %p156
    %p158 = pneg %p157
    // Predicated region
    $region9: #{se_layer.1} parent=5 // pred_check
      _
    $region10: #{se_layer.1} parent=5 // pred_check_branch
      %160 = sbr.rel (%p157) target = $region12
    $region11: #{se_layer.1} parent=5 // pred_region
      %s161 = ssub.s32 %s11, 1
      // Predicated region
      $region13: #{se_layer.1} parent=11 // pred_check
        %p162 = pneg %p58
      $region14: #{se_layer.1} parent=11 // pred_check_branch
        %164 = sbr.rel (%p162) target = $region16
      $region15: #{se_layer.1} parent=11 // pred_region
        _
      $region16: #{se_layer.1} parent=11 // pred_fallthru
        _
      // Predicated region
      $region17: #{se_layer.1} parent=11 // pred_check
        %p165 = pneg %p79
      $region18: #{se_layer.1} parent=11 // pred_check_branch
        %167 = sbr.rel (%p165) target = $region20
      $region19: #{se_layer.1} parent=11 // pred_region
        _
      $region20: #{se_layer.1} parent=11 // pred_fallthru
        _
      // Predicated region
      $region21: #{se_layer.1} parent=11 // pred_check
        %p168 = pneg %p100
      $region22: #{se_layer.1} parent=11 // pred_check_branch
        %170 = sbr.rel (%p168) target = $region24
      $region23: #{se_layer.1} parent=11 // pred_region
        _
      $region24: #{se_layer.1} parent=11 // pred_fallthru
        _
      // Predicated region
      $region25: #{se_layer.1} parent=11 // pred_check
        %p171 = pneg %p121
      $region26: #{se_layer.1} parent=11 // pred_check_branch
        %173 = sbr.rel (%p171) target = $region28
      $region27: #{se_layer.1} parent=11 // pred_region
        _
      $region28: #{se_layer.1} parent=11 // pred_fallthru
        _
    $region12: #{se_layer.1} parent=5 // pred_fallthru
      _
    %p174 = scmp.lt.s32.totalorder %s11, 2
    // Predicated region
    $region29: #{se_layer.1} parent=5 // pred_check
      %p175 = pneg %p174
    $region30: #{se_layer.1} parent=5 // pred_check_branch
      %177 = sbr.rel (%p175) target = $region32
    $region31: #{se_layer.1} parent=5 // pred_region
      // Predicated region
      $region33: #{se_layer.1} parent=31 // pred_check
        %p178 = pneg %p31
      $region34: #{se_layer.1} parent=31 // pred_check_branch
        %180 = sbr.rel (%p178) target = $region36
      $region35: #{se_layer.1} parent=31 // pred_region
        %p181 = scmp.lt.s32.totalorder %s11, 1
        %s182 = scalar_select %p181, %s11, 1
        %s183 = smul.addr %s182, 2
        %s184 = smul.addr %s183, 8
        %s185 = scalar_lea.vmem %s0, %s184
      $region36: #{se_layer.1} parent=31 // pred_fallthru
        _
    $region32: #{se_layer.1} parent=5 // pred_fallthru
      _
    %p186 = scmp.le.s32.totalorder 1, %s11
    %p187 = scmp.lt.s32.totalorder %s11, 3
    %p188 = pnand %p186, %p187
    %p189 = pneg %p188
    // Predicated region
    $region37: #{se_layer.1} parent=5 // pred_check
      _
    $region38: #{se_layer.1} parent=5 // pred_check_branch
      %191 = sbr.rel (%p188) target = $region40
    $region39: #{se_layer.1} parent=5 // pred_region
      %s192 = ssub.s32 %s11, 1
      %p193 = scmp.lt.s32.totalorder %s16, 1
      %s194 = scalar_select %p193, %s16, 1
      %s195 = smul.addr %s194, 2
      %s196 = smul.addr %s195, 8
      %s197 = scalar_lea.vmem %s0, %s196
      %p198 = pneg %p37
      %p199 = pneg %p34
      %p200 = pneg %p58
      %p201 = pneg %p55
      %p202 = pneg %p79
      %p203 = pneg %p76
      %p204 = pneg %p100
      %p205 = pneg %p97
      %p206 = pneg %p121
      %p207 = pneg %p118
      %p208 = pneg %p147
      %p209 = pneg %p144
      %p210 = scmp.lt.s32.totalorder %s16, 1
      %s211 = scalar_select %p210, %s16, 1
      %s212 = smul.addr %s211, 2
      %s213 = smul.addr %s212, 8
      %s214 = scalar_lea.vmem %s5, %s213
      %p215 = scmp.lt.s32.totalorder %s16, 1
      %s216 = scalar_select %p215, %s16, 1
      %s217 = smul.addr %s216, 2
      %s218 = smul.addr %s217, 8
      %s219 = scalar_lea.vmem %s0, %s218
      %p220 = scmp.lt.s32.totalorder %s16, 1
      %s221 = scalar_select %p220, %s16, 1
      %s222 = smul.addr %s221, 2
      %s223 = smul.addr %s222, 8
      %s224 = scalar_lea.vmem %s5, %s223
      %v225 = vld [vmem:[%s219] sm:$0xff]
      %v226 = vld [vmem:[%s219 + $0x8] sm:$0xff]
      %v227 = vadd.f32 %v225, %v226
      %228 = vadd.xlane.f32.xlu0 %v227
      %v229 = vpop.xlane.xlu0 %228
      %v230 = vld [vmem:[%s1] sm:$0xff]
      %v231 = vld [vmem:[%s2] sm:$0x1]
      %v233 = vlaneseq
      %v234 = vand.u32 %v233, 127
      %v235 = vlaneseq
      %v236 = vshrl.u32 %v235, 7
      %v237 = vsub.s32 %v234, %v236
      %v238 = vrot.slane %v229, %v237
      %vm239 = vcmask 64512
      %v240 = vsel %vm239, %v238, 0
      %242 = vmatprep.subr.mxu0 0.0
      %243 = vmatpush1.msra.mxu0 0.0
      %244 = vmatprep.subr.mxu0 0.0
      %245 = vmatpush1.msra.mxu0 0.0
      %246 = vmatprep.subr.mxu0 0.0
      %247 = vmatpush1.msra.mxu0 0.0
      %248 = vmatprep.subr.mxu0 0.0
      %249 = vmatpush1.msra.mxu0 0.0
      %250 = vmatprep.subr.mxu0 0.0
      %251 = vmatpush1.msra.mxu0 0.0
      %252 = vmatprep.subr.mxu0 0.0
      %253 = vmatpush1.msra.mxu0 0.0
      %254 = vmatprep.subr.mxu0 0.0
      %255 = vmatpush1.msra.mxu0 0.0
      %256 = vmatprep.subr.mxu0 0.0
      %257 = vmatpush1.msra.mxu0 0.0
      %258 = vmatprep.subr.mxu0 0.0
      %259 = vmatpush1.msra.mxu0 0.0
      %260 = vmatprep.subr.mxu0 0.0
      %261 = vmatpush1.msra.mxu0 0.0
      %262 = vmatprep.subr.mxu0 0.0
      %263 = vmatpush1.msra.mxu0 0.0
      %264 = vmatprep.subr.mxu0 0.0
      %265 = vmatpush1.msra.mxu0 0.0
      %266 = vmatprep.subr.mxu0 0.0
      %267 = vmatpush1.msra.mxu0 0.0
      %268 = vmatprep.subr.mxu0 0.0
      %269 = vmatpush1.msra.mxu0 0.0
      %270 = vmatprep.subr.mxu0 0.0
      %271 = vmatpush1.msra.mxu0 0.0
      %272 = vmatprep.subr.mxu0 0.0
      %273 = vmatpush1.msra.mxu0 %v230
      %274 = vmatprep.subr.mxu0 0.0
      %275 = vmatpush2.msra.mxu0 0.0
      %276 = vmatprep.subr.mxu0 0.0
      %277 = vmatpush2.msra.mxu0 0.0
      %278 = vmatprep.subr.mxu0 0.0
      %279 = vmatpush2.msra.mxu0 0.0
      %280 = vmatprep.subr.mxu0 0.0
      %281 = vmatpush2.msra.mxu0 0.0
      %282 = vmatprep.subr.mxu0 0.0
      %283 = vmatpush2.msra.mxu0 0.0
      %284 = vmatprep.subr.mxu0 0.0
      %285 = vmatpush2.msra.mxu0 0.0
      %286 = vmatprep.subr.mxu0 0.0
      %287 = vmatpush2.msra.mxu0 0.0
      %288 = vmatprep.subr.mxu0 0.0
      %289 = vmatpush2.msra.mxu0 0.0
      %290 = vmatprep.subr.mxu0 0.0
      %291 = vmatpush2.msra.mxu0 0.0
      %292 = vmatprep.subr.mxu0 0.0
      %293 = vmatpush2.msra.mxu0 0.0
      %294 = vmatprep.subr.mxu0 0.0
      %295 = vmatpush2.msra.mxu0 0.0
      %296 = vmatprep.subr.mxu0 0.0
      %297 = vmatpush2.msra.mxu0 0.0
      %298 = vmatprep.subr.mxu0 0.0
      %299 = vmatpush2.msra.mxu0 0.0
      %300 = vmatprep.subr.mxu0 0.0
      %301 = vmatpush2.msra.mxu0 0.0
      %302 = vmatprep.subr.mxu0 0.0
      %303 = vmatpush2.msra.mxu0 0.0
      %304 = vmatprep.subr.mxu0 0.0
      %305 = vmatpush2.msra.mxu0 0.0
      %306 = vmatprep.mubr.f32.mxu0 0.0
      %307 = vmatmul.mubr.f32.gmra.mxu0 %v240
      %v308 = vpop.f32.mrf.mxu0
      %v309 = vadd.f32 %v231, %v308
      %v310 = vpop.f32.mrf.mxu0
      %311 = vdwg.mxu0
      %v312 = vmax.f32 %v309, 0.0
      %v313 = vld [vmem:[%s3] sm:$0x3]
      %v314 = vld [vmem:[%s4] sm:$0x1]
      %vm315 = vcmask 15360
      %v317 = vsel %vm315, %v312, 0
      %vm319 = vcmask 1041408
      %v321 = vsel %vm319, %v313, 0
      %323 = vmatprep.subr.mxu0 0.0
      %324 = vmatpush1.msra.mxu0 0.0
      %325 = vmatprep.subr.mxu0 0.0
      %326 = vmatpush1.msra.mxu0 0.0
      %327 = vmatprep.subr.mxu0 0.0
      %328 = vmatpush1.msra.mxu0 0.0
      %329 = vmatprep.subr.mxu0 0.0
      %330 = vmatpush1.msra.mxu0 0.0
      %331 = vmatprep.subr.mxu0 0.0
      %332 = vmatpush1.msra.mxu0 0.0
      %333 = vmatprep.subr.mxu0 0.0
      %334 = vmatpush1.msra.mxu0 0.0
      %335 = vmatprep.subr.mxu0 0.0
      %336 = vmatpush1.msra.mxu0 0.0
      %337 = vmatprep.subr.mxu0 0.0
      %338 = vmatpush1.msra.mxu0 0.0
      %339 = vmatprep.subr.mxu0 0.0
      %340 = vmatpush1.msra.mxu0 0.0
      %341 = vmatprep.subr.mxu0 0.0
      %342 = vmatpush1.msra.mxu0 0.0
      %343 = vmatprep.subr.mxu0 0.0
      %344 = vmatpush1.msra.mxu0 0.0
      %345 = vmatprep.subr.mxu0 0.0
      %346 = vmatpush1.msra.mxu0 0.0
      %347 = vmatprep.subr.mxu0 0.0
      %348 = vmatpush1.msra.mxu0 0.0
      %349 = vmatprep.subr.mxu0 0.0
      %350 = vmatpush1.msra.mxu0 0.0
      %351 = vmatprep.subr.mxu0 0.0
      %352 = vmatpush1.msra.mxu0 0.0
      %353 = vmatprep.subr.mxu0 0.0
      %354 = vmatpush1.msra.mxu0 %v321
      %355 = vmatprep.subr.mxu0 0.0
      %356 = vmatpush2.msra.mxu0 0.0
      %357 = vmatprep.subr.mxu0 0.0
      %358 = vmatpush2.msra.mxu0 0.0
      %359 = vmatprep.subr.mxu0 0.0
      %360 = vmatpush2.msra.mxu0 0.0
      %361 = vmatprep.subr.mxu0 0.0
      %362 = vmatpush2.msra.mxu0 0.0
      %363 = vmatprep.subr.mxu0 0.0
      %364 = vmatpush2.msra.mxu0 0.0
      %365 = vmatprep.subr.mxu0 0.0
      %366 = vmatpush2.msra.mxu0 0.0
      %367 = vmatprep.subr.mxu0 0.0
      %368 = vmatpush2.msra.mxu0 0.0
      %369 = vmatprep.subr.mxu0 0.0
      %370 = vmatpush2.msra.mxu0 0.0
      %371 = vmatprep.subr.mxu0 0.0
      %372 = vmatpush2.msra.mxu0 0.0
      %373 = vmatprep.subr.mxu0 0.0
      %374 = vmatpush2.msra.mxu0 0.0
      %375 = vmatprep.subr.mxu0 0.0
      %376 = vmatpush2.msra.mxu0 0.0
      %377 = vmatprep.subr.mxu0 0.0
      %378 = vmatpush2.msra.mxu0 0.0
      %379 = vmatprep.subr.mxu0 0.0
      %380 = vmatpush2.msra.mxu0 0.0
      %381 = vmatprep.subr.mxu0 0.0
      %382 = vmatpush2.msra.mxu0 0.0
      %383 = vmatprep.subr.mxu0 0.0
      %384 = vmatpush2.msra.mxu0 0.0
      %385 = vmatprep.subr.mxu0 0.0
      %386 = vmatpush2.msra.mxu0 0.0
      %387 = vmatprep.mubr.f32.mxu0 0.0
      %388 = vmatmul.mubr.f32.gmra.mxu0 %v317
      %v389 = vpop.f32.mrf.mxu0
      %v390 = vadd.f32 %v314, %v389
      %v391 = vpop.f32.mrf.mxu0
      %392 = vdwg.mxu0
      %v393 = vadd.f32 %v390, 3.0
      %v394 = vmax.f32 %v393, 0.0
      %v395 = vmin.f32 %v394, 6.0
      %v396 = vmul.f32 %v395, 0.16666667
      %v397 = vlaneseq
      %v398 = vshrl.u32 %v397, 7
      %v399 = vsub.s32 0, %v398
      %v400 = vrot.slane %v396, %v399
      %402 = vbcast.lane.b32.xlu0 %v400, 256
      %v403 = vpop.permute.xlu0 %402
      %v404 = vmul.f32 %v225, %v403
      %v405 = vmul.f32 %v226, %v403
      %406 = vst [vmem:[%s224] sm:$0xff] %v404
      %407 = vst [vmem:[%s224 + $0x8] sm:$0xff] %v405
      %p408 = scmp.lt.s32.totalorder %s16, 1
      %s409 = scalar_select %p408, %s16, 1
      %s410 = smul.addr %s409, 2
      %s411 = smul.addr %s410, 8
      %s412 = scalar_lea.vmem %s5, %s411
      // Predicated region
      $region41: #{se_layer.1} parent=39 // pred_check
        %p413 = pneg %p144
      $region42: #{se_layer.1} parent=39 // pred_check_branch
        %415 = sbr.rel (%p413) target = $region44
      $region43: #{se_layer.1} parent=39 // pred_region
        _
      $region44: #{se_layer.1} parent=39 // pred_fallthru
        _
    $region40: #{se_layer.1} parent=5 // pred_fallthru
      _
    %p416 = scmp.le.s32.totalorder 2, %s11
    // Predicated region
    $region45: #{se_layer.1} parent=5 // pred_check
      %p417 = pneg %p416
    $region46: #{se_layer.1} parent=5 // pred_check_branch
      %419 = sbr.rel (%p417) target = $region48
    $region47: #{se_layer.1} parent=5 // pred_region
      %s420 = ssub.s32 %s11, 2
      // Predicated region
      $region49: #{se_layer.1} parent=47 // pred_check
        %p421 = pneg %p150
      $region50: #{se_layer.1} parent=47 // pred_check_branch
        %423 = sbr.rel (%p421) target = $region52
      $region51: #{se_layer.1} parent=47 // pred_region
        %p424 = scmp.lt.s32.totalorder %s17, 1
        %s425 = scalar_select %p424, %s17, 1
        %s426 = smul.addr %s425, 2
        %s427 = smul.addr %s426, 8
        %s428 = scalar_lea.vmem %s5, %s427
      $region52: #{se_layer.1} parent=47 // pred_fallthru
        _
    $region48: #{se_layer.1} parent=5 // pred_fallthru
      _
  $region6: #{se_layer.1} parent=0 // loop_footer
    %s15 = sadd.s32 1, %s11
  $region7: #{se_layer.1} parent=0 // loop_footer_branch
    %10 = sbr.rel target = $region3
  $region8: #{se_layer.1} parent=0 // loop_exit
    _

</llo_original>
